<compile_context>
chip_gen: v7x
topology: tpu7x:2x2x1
jax: 0.10.0
libtpu: 0.0.40
codegen_flags: <defaults>
</compile_context>

<pallas_src>
import jax
import jax.numpy as jnp
import numpy as np
from jax import lax
from jax.experimental import pallas as pl
from jax.experimental.pallas import tpu as pltpu

# Thresholds: del_j(1.05), del_j(1.1), del_i(1)=1.25, del_i(2)=1.25^2, del_i(3)=1.25^3
THRESHOLDS = (1.05, 1.1, 1.25, 1.25 ** 2, 1.25 ** 3)
NUM_Q = 1 + len(THRESHOLDS)      # valid-pixel count + 5 threshold counts

LANES = 128
SUBLANES = 8
MAX_R_TILE = 2048                # rows per grid step (<= 1 MiB f32 per input block)
MAX_UNROLL = 8


def _round_up(x, m):
    return -(-x // m) * m


def _cdiv(a, b):
    return -(-a // b)


def _tensorcores_per_chip():
    """Best-effort TC count; safe fallback of 1 (correct everywhere)."""
    try:
        info = pltpu.get_tpu_info()
        for name in ("num_cores", "core_count", "num_tensorcores", "cores_per_chip"):
            v = getattr(info, name, None)
            if isinstance(v, int) and v >= 1:
                return v
    except Exception:
        pass
    return 1


_NUM_TC = _tensorcores_per_chip()


def _accumulate_chunk(pred_ref, tgt_ref, row, chunk, carry):
    """Accumulate one (chunk, 128) pixel slab into the loop-carried sums."""
    o = pred_ref[pl.ds(row, chunk), :].astype(jnp.float32)
    t = tgt_ref[pl.ds(row, chunk), :].astype(jnp.float32)

    val = jnp.where(t > 0.0, 1.0, 0.0)       # padded pixels have t == 0 -> invalid
    ov = o * val
    tv = t * val
    den = ov + 0.001
    den_nonpos = den <= 0.0

    out = [carry[0] + val]
    for i, th in enumerate(THRESHOLDS):
        # rel < th  <=>  (r1 < th) and (r2 < th), division-free exact rewrite.
        c1 = jnp.logical_or(den_nonpos, tv < th * den)   # r1 = tv / den
        c2 = ov < th * tv                                # r2 = ov / tv; invalid -> False
        out.append(carry[i + 1] + jnp.where(jnp.logical_and(c1, c2), 1.0, 0.0))
    return tuple(out)


def _deltas_kernel(pred_ref, tgt_ref, acc_ref):
    """Streaming reduction over one (r_tile, 128) pixel tile.

    pred_ref, tgt_ref : (r_tile, 128) VMEM blocks (native float dtype)
    acc_ref           : (NUM_Q, 8, 128) f32 output block, resident across the
                        pixel-tile grid axis (accumulator pattern).
    """
    k = pl.program_id(2)

    r_tile = pred_ref.shape[0]
    itemsize = min(jnp.dtype(pred_ref.dtype).itemsize,
                   jnp.dtype(tgt_ref.dtype).itemsize)
    chunk = SUBLANES if itemsize >= 4 else 2 * SUBLANES   # one packed vreg of rows
    n_chunks = r_tile // chunk

    unroll = 1
    while unroll < MAX_UNROLL and n_chunks % (unroll * 2) == 0:
        unroll *= 2
    stride = chunk * unroll

    def body(step, carry):
        base = pl.multiple_of(step * stride, stride)
        for u in range(unroll):
            carry = _accumulate_chunk(pred_ref, tgt_ref, base + u * chunk,
                                      chunk, carry)
        return carry

    init = tuple(jnp.zeros((chunk, LANES), jnp.float32) for _ in range(NUM_Q))
    sums = lax.fori_loop(0, n_chunks // unroll, body, init)

    def fold(x):
        # (chunk, 128) -> (8, 128); no-op for f32 chunks, one VALU add for 16-row.
        if x.shape[0] == SUBLANES:
            return x
        return jnp.sum(x.reshape(-1, SUBLANES, LANES), axis=0)

    @pl.when(k == 0)
    def _():
        for q in range(NUM_Q):
            acc_ref[q] = fold(sums[q])

    @pl.when(k > 0)
    def _():
        for q in range(NUM_Q):
            acc_ref[q] += fold(sums[q])


@jax.jit
def deltas_paint(outputs, target):
    """JAX/Pallas equivalent of Deltas_Paint.forward(outputs, target).

    Returns (delta_1.05, delta_1.1, delta_1.25, delta_1.25^2, delta_1.25^3, cnt),
    cnt with shape (B, 1, 1), matching the PyTorch module.
    """
    B = outputs.shape[0]
    N = int(np.prod(outputs.shape[1:]))

    # Native float dtypes stream straight through (upcast per chunk in-kernel),
    # avoiding a full HBM copy from a wrapper-side astype.
    def as_float(x):
        if x.dtype in (jnp.float32, jnp.bfloat16, jnp.float16):
            return x
        return x.astype(jnp.float32)

    o = as_float(outputs)
    t = as_float(target)

    # ---- static tiling decisions (shapes are static under jit) -------------
    itemsize = min(o.dtype.itemsize, t.dtype.itemsize)
    salign = SUBLANES if itemsize >= 4 else 2 * SUBLANES

    r0 = _cdiv(N, LANES)                              # rows of 128 lanes needed
    nsplit = 2 if (_NUM_TC >= 2 and r0 >= 2 * salign) else 1
    rows_per_split = _cdiv(r0, nsplit)
    kt = _cdiv(rows_per_split, MAX_R_TILE)            # pixel-tile steps per split
    r_tile = _round_up(_cdiv(rows_per_split, kt), salign)
    rows_per_split = kt * r_tile
    r_total = nsplit * rows_per_split
    n_pad = r_total * LANES

    # ---- lane/sublane-dense layout ------------------------------------------
    o2 = o.reshape(B, N)
    t2 = t.reshape(B, N)
    if n_pad > N:                                     # skip the copy when aligned
        pad = ((0, 0), (0, n_pad - N))
        o2 = jnp.pad(o2, pad)    # padded target stays 0 -> invalid, never counted
        t2 = jnp.pad(t2, pad)
    o3 = o2.reshape(B, r_total, LANES)
    t3 = t2.reshape(B, r_total, LANES)

    in_spec = pl.BlockSpec((None, r_tile, LANES),
                           lambda b, s, k: (b, s * kt + k, 0))
    out_spec = pl.BlockSpec((None, None, NUM_Q, SUBLANES, LANES),
                            lambda b, s, k: (b, s, 0, 0, 0))

    partial = pl.pallas_call(
        _deltas_kernel,
        out_shape=jax.ShapeDtypeStruct((B, nsplit, NUM_Q, SUBLANES, LANES),
                                       jnp.float32),
        grid=(B, nsplit, kt),
        in_specs=[in_spec, in_spec],
        out_specs=out_spec,
        compiler_params=pltpu.CompilerParams(
            dimension_semantics=("parallel", "parallel", "arbitrary")),
    )(o3, t3)

    # Single cross-lane reduce, once, outside the streaming loop.
    sums = jnp.sum(partial, axis=(1, 3, 4))           # (B, NUM_Q)
    cnt = sums[:, 0].reshape(B, 1, 1)                 # torch-shaped (B, 1, 1)
    # NOTE: like torch, a batch element with cnt == 0 yields NaN (0/0).
    deltas = jnp.mean(sums[:, 1:] / sums[:, :1], axis=0)
    return (deltas[0], deltas[1], deltas[2], deltas[3], deltas[4], cnt)


def _deltas_paint_ref(outputs, target):
    """Pure-JAX reference mirroring the torch code (divides + NaN semantics)."""
    o = outputs.astype(jnp.float32)
    t = target.astype(jnp.float32)
    val = (t > 0).astype(jnp.float32)
    rel = jnp.maximum(t * val / (o * val + 0.001), o * val / (t * val))
    B = o.shape[0]
    cnt = jnp.sum(val.reshape(B, 1, -1), axis=-1, keepdims=True)

    def d(th):
        r = jnp.where(rel < th, 1.0, 0.0)
        delta = jnp.sum(r.reshape(B, 1, -1), axis=-1, keepdims=True) / cnt
        return jnp.mean(delta)

    return (d(1.05), d(1.1), d(1.25), d(1.25 ** 2), d(1.25 ** 3), cnt)


if __name__ == "__main__":
    key = jax.random.PRNGKey(0)

    def make_inputs(k, shape):
        k1, k2, k3 = jax.random.split(k, 3)
        depth = jax.random.uniform(k1, shape, minval=0.5, maxval=10.0,
                                   dtype=jnp.float32)
        hole_mask = jax.random.uniform(k2, shape) > 0.3          # ~70% valid
        target = jnp.where(hole_mask, depth, 0.0)
        outputs = depth * (1.0 + 0.1 * jax.random.normal(k3, shape,
                                                         dtype=jnp.float32))
        return outputs, target

    # Second shape has N not a multiple of 128 to exercise the padding path.
    for i, shape in enumerate([(2, 4, 16, 16), (2, 3, 15, 17)]):
        o, t = make_inputs(jax.random.fold_in(key, i), shape)
        got = jax.block_until_ready(deltas_paint(o, t))
        exp = _deltas_paint_ref(o, t)
        for g, e in zip(got, exp):
            np.testing.assert_allclose(np.asarray(g), np.asarray(e),
                                       rtol=1e-5, atol=1e-6)

    print("KERNEL_OK")
</pallas_src>

<mosaic_0001>
module attributes {stable_mosaic.version = 11 : i64} {
  func.func @_deltas_kernel(%arg0: i32, %arg1: i32, %arg2: i32, %arg3: memref<1x8x128xf32, #tpu.memory_space<vmem>>, %arg4: memref<1x8x128xf32, #tpu.memory_space<vmem>>, %arg5: memref<1x1x6x8x128xf32, #tpu.memory_space<vmem>>) attributes {dimension_semantics = [#tpu.dimension_semantics<parallel>, #tpu.dimension_semantics<parallel>, #tpu.dimension_semantics<arbitrary>], iteration_bounds = array<i64: 2, 1, 1>, scalar_prefetch = 0 : i64, scratch_operands = 0 : i64, tpu.core_type = #tpu.core_type<tc>, window_params = [{transform_indices = @transform_0, window_bounds = array<i64: 1, 8, 128>}, {transform_indices = @transform_1, window_bounds = array<i64: 1, 8, 128>}, {transform_indices = @transform_2, window_bounds = array<i64: 1, 1, 6, 8, 128>}]} {
    %cst = arith.constant 0.000000e+00 : f32
    %0 = vector.broadcast %cst : f32 to vector<8x128xf32>
    %cst_0 = arith.constant 0.000000e+00 : f32
    %1 = vector.broadcast %cst_0 : f32 to vector<8x128xf32>
    %cst_1 = arith.constant 0.000000e+00 : f32
    %2 = vector.broadcast %cst_1 : f32 to vector<8x128xf32>
    %cst_2 = arith.constant 0.000000e+00 : f32
    %3 = vector.broadcast %cst_2 : f32 to vector<8x128xf32>
    %cst_3 = arith.constant 0.000000e+00 : f32
    %4 = vector.broadcast %cst_3 : f32 to vector<8x128xf32>
    %cst_4 = arith.constant 0.000000e+00 : f32
    %5 = vector.broadcast %cst_4 : f32 to vector<8x128xf32>
    %c0_i32 = arith.constant 0 : i32
    %c8_i32 = arith.constant 8 : i32
    %6 = arith.muli %c0_i32, %c8_i32 : i32
    %7 = tpu.assume_multiple %6, 8 : i32
    %c0_i32_5 = arith.constant 0 : i32
    %8 = arith.addi %7, %c0_i32_5 : i32
    %c0 = arith.constant 0 : index
    %9 = arith.index_cast %8 : i32 to index
    %c0_6 = arith.constant 0 : index
    %10 = vector.load %arg3[%c0, %9, %c0_6] : memref<1x8x128xf32, #tpu.memory_space<vmem>>, vector<1x8x128xf32>
    %11 = vector.shape_cast %10 : vector<1x8x128xf32> to vector<8x128xf32>
    %c0_7 = arith.constant 0 : index
    %12 = arith.index_cast %8 : i32 to index
    %c0_8 = arith.constant 0 : index
    %13 = vector.load %arg4[%c0_7, %12, %c0_8] : memref<1x8x128xf32, #tpu.memory_space<vmem>>, vector<1x8x128xf32>
    %14 = vector.shape_cast %13 : vector<1x8x128xf32> to vector<8x128xf32>
    %cst_9 = arith.constant 0.000000e+00 : f32
    %15 = vector.broadcast %cst_9 : f32 to vector<8x128xf32>
    %16 = arith.cmpf ogt, %14, %15 : vector<8x128xf32>
    %cst_10 = arith.constant 1.000000e+00 : f32
    %cst_11 = arith.constant 0.000000e+00 : f32
    %17 = vector.broadcast %cst_10 : f32 to vector<8x128xf32>
    %18 = vector.broadcast %cst_11 : f32 to vector<8x128xf32>
    %19 = arith.select %16, %17, %18 : vector<8x128xi1>, vector<8x128xf32>
    %20 = arith.mulf %11, %19 : vector<8x128xf32>
    %21 = arith.mulf %14, %19 : vector<8x128xf32>
    %cst_12 = arith.constant 1.000000e-03 : f32
    %22 = vector.broadcast %cst_12 : f32 to vector<8x128xf32>
    %23 = arith.addf %20, %22 : vector<8x128xf32>
    %cst_13 = arith.constant 0.000000e+00 : f32
    %24 = vector.broadcast %cst_13 : f32 to vector<8x128xf32>
    %25 = arith.cmpf ole, %23, %24 : vector<8x128xf32>
    %26 = arith.addf %0, %19 : vector<8x128xf32>
    %cst_14 = arith.constant 1.050000e+00 : f32
    %27 = vector.broadcast %cst_14 : f32 to vector<8x128xf32>
    %28 = arith.mulf %27, %23 : vector<8x128xf32>
    %29 = arith.cmpf olt, %21, %28 : vector<8x128xf32>
    %30 = arith.ori %25, %29 : vector<8x128xi1>
    %cst_15 = arith.constant 1.050000e+00 : f32
    %31 = vector.broadcast %cst_15 : f32 to vector<8x128xf32>
    %32 = arith.mulf %31, %21 : vector<8x128xf32>
    %33 = arith.cmpf olt, %20, %32 : vector<8x128xf32>
    %34 = arith.andi %30, %33 : vector<8x128xi1>
    %cst_16 = arith.constant 1.000000e+00 : f32
    %cst_17 = arith.constant 0.000000e+00 : f32
    %35 = vector.broadcast %cst_16 : f32 to vector<8x128xf32>
    %36 = vector.broadcast %cst_17 : f32 to vector<8x128xf32>
    %37 = arith.select %34, %35, %36 : vector<8x128xi1>, vector<8x128xf32>
    %38 = arith.addf %1, %37 : vector<8x128xf32>
    %cst_18 = arith.constant 1.100000e+00 : f32
    %39 = vector.broadcast %cst_18 : f32 to vector<8x128xf32>
    %40 = arith.mulf %39, %23 : vector<8x128xf32>
    %41 = arith.cmpf olt, %21, %40 : vector<8x128xf32>
    %42 = arith.ori %25, %41 : vector<8x128xi1>
    %cst_19 = arith.constant 1.100000e+00 : f32
    %43 = vector.broadcast %cst_19 : f32 to vector<8x128xf32>
    %44 = arith.mulf %43, %21 : vector<8x128xf32>
    %45 = arith.cmpf olt, %20, %44 : vector<8x128xf32>
    %46 = arith.andi %42, %45 : vector<8x128xi1>
    %cst_20 = arith.constant 1.000000e+00 : f32
    %cst_21 = arith.constant 0.000000e+00 : f32
    %47 = vector.broadcast %cst_20 : f32 to vector<8x128xf32>
    %48 = vector.broadcast %cst_21 : f32 to vector<8x128xf32>
    %49 = arith.select %46, %47, %48 : vector<8x128xi1>, vector<8x128xf32>
    %50 = arith.addf %2, %49 : vector<8x128xf32>
    %cst_22 = arith.constant 1.250000e+00 : f32
    %51 = vector.broadcast %cst_22 : f32 to vector<8x128xf32>
    %52 = arith.mulf %51, %23 : vector<8x128xf32>
    %53 = arith.cmpf olt, %21, %52 : vector<8x128xf32>
    %54 = arith.ori %25, %53 : vector<8x128xi1>
    %cst_23 = arith.constant 1.250000e+00 : f32
    %55 = vector.broadcast %cst_23 : f32 to vector<8x128xf32>
    %56 = arith.mulf %55, %21 : vector<8x128xf32>
    %57 = arith.cmpf olt, %20, %56 : vector<8x128xf32>
    %58 = arith.andi %54, %57 : vector<8x128xi1>
    %cst_24 = arith.constant 1.000000e+00 : f32
    %cst_25 = arith.constant 0.000000e+00 : f32
    %59 = vector.broadcast %cst_24 : f32 to vector<8x128xf32>
    %60 = vector.broadcast %cst_25 : f32 to vector<8x128xf32>
    %61 = arith.select %58, %59, %60 : vector<8x128xi1>, vector<8x128xf32>
    %62 = arith.addf %3, %61 : vector<8x128xf32>
    %cst_26 = arith.constant 1.562500e+00 : f32
    %63 = vector.broadcast %cst_26 : f32 to vector<8x128xf32>
    %64 = arith.mulf %63, %23 : vector<8x128xf32>
    %65 = arith.cmpf olt, %21, %64 : vector<8x128xf32>
    %66 = arith.ori %25, %65 : vector<8x128xi1>
    %cst_27 = arith.constant 1.562500e+00 : f32
    %67 = vector.broadcast %cst_27 : f32 to vector<8x128xf32>
    %68 = arith.mulf %67, %21 : vector<8x128xf32>
    %69 = arith.cmpf olt, %20, %68 : vector<8x128xf32>
    %70 = arith.andi %66, %69 : vector<8x128xi1>
    %cst_28 = arith.constant 1.000000e+00 : f32
    %cst_29 = arith.constant 0.000000e+00 : f32
    %71 = vector.broadcast %cst_28 : f32 to vector<8x128xf32>
    %72 = vector.broadcast %cst_29 : f32 to vector<8x128xf32>
    %73 = arith.select %70, %71, %72 : vector<8x128xi1>, vector<8x128xf32>
    %74 = arith.addf %4, %73 : vector<8x128xf32>
    %cst_30 = arith.constant 1.953125 : f32
    %75 = vector.broadcast %cst_30 : f32 to vector<8x128xf32>
    %76 = arith.mulf %75, %23 : vector<8x128xf32>
    %77 = arith.cmpf olt, %21, %76 : vector<8x128xf32>
    %78 = arith.ori %25, %77 : vector<8x128xi1>
    %cst_31 = arith.constant 1.953125 : f32
    %79 = vector.broadcast %cst_31 : f32 to vector<8x128xf32>
    %80 = arith.mulf %79, %21 : vector<8x128xf32>
    %81 = arith.cmpf olt, %20, %80 : vector<8x128xf32>
    %82 = arith.andi %78, %81 : vector<8x128xi1>
    %cst_32 = arith.constant 1.000000e+00 : f32
    %cst_33 = arith.constant 0.000000e+00 : f32
    %83 = vector.broadcast %cst_32 : f32 to vector<8x128xf32>
    %84 = vector.broadcast %cst_33 : f32 to vector<8x128xf32>
    %85 = arith.select %82, %83, %84 : vector<8x128xi1>, vector<8x128xf32>
    %86 = arith.addf %5, %85 : vector<8x128xf32>
    %c1_i32 = arith.constant 1 : i32
    %c0_i32_34 = arith.constant 0 : i32
    %87 = arith.cmpi eq, %arg2, %c0_i32_34 : i32
    %88 = arith.extui %87 : i1 to i32
    %c0_i32_35 = arith.constant 0 : i32
    %89 = arith.cmpi ne, %88, %c0_i32_35 : i32
    scf.if %89 {
      %c0_38 = arith.constant 0 : index
      %c0_39 = arith.constant 0 : index
      %c0_40 = arith.constant 0 : index
      %c0_41 = arith.constant 0 : index
      %c0_42 = arith.constant 0 : index
      %93 = vector.load %arg5[%c0_38, %c0_39, %c0_40, %c0_41, %c0_42] : memref<1x1x6x8x128xf32, #tpu.memory_space<vmem>>, vector<1x1x1x8x128xf32>
      %94 = vector.shape_cast %93 : vector<1x1x1x8x128xf32> to vector<8x128xf32>
      %95 = vector.shape_cast %26 : vector<8x128xf32> to vector<1x1x1x8x128xf32>
      tpu.vector_store %arg5[%c0_38, %c0_39, %c0_40, %c0_41, %c0_42], %95 {strides = array<i32>} : memref<1x1x6x8x128xf32, #tpu.memory_space<vmem>>, vector<1x1x1x8x128xf32>,
      %c0_43 = arith.constant 0 : index
      %c0_44 = arith.constant 0 : index
      %c1 = arith.constant 1 : index
      %c0_45 = arith.constant 0 : index
      %c0_46 = arith.constant 0 : index
      %96 = vector.load %arg5[%c0_43, %c0_44, %c1, %c0_45, %c0_46] : memref<1x1x6x8x128xf32, #tpu.memory_space<vmem>>, vector<1x1x1x8x128xf32>
      %97 = vector.shape_cast %96 : vector<1x1x1x8x128xf32> to vector<8x128xf32>
      %98 = vector.shape_cast %38 : vector<8x128xf32> to vector<1x1x1x8x128xf32>
      tpu.vector_store %arg5[%c0_43, %c0_44, %c1, %c0_45, %c0_46], %98 {strides = array<i32>} : memref<1x1x6x8x128xf32, #tpu.memory_space<vmem>>, vector<1x1x1x8x128xf32>,
      %c0_47 = arith.constant 0 : index
      %c0_48 = arith.constant 0 : index
      %c2 = arith.constant 2 : index
      %c0_49 = arith.constant 0 : index
      %c0_50 = arith.constant 0 : index
      %99 = vector.load %arg5[%c0_47, %c0_48, %c2, %c0_49, %c0_50] : memref<1x1x6x8x128xf32, #tpu.memory_space<vmem>>, vector<1x1x1x8x128xf32>
      %100 = vector.shape_cast %99 : vector<1x1x1x8x128xf32> to vector<8x128xf32>
      %101 = vector.shape_cast %50 : vector<8x128xf32> to vector<1x1x1x8x128xf32>
      tpu.vector_store %arg5[%c0_47, %c0_48, %c2, %c0_49, %c0_50], %101 {strides = array<i32>} : memref<1x1x6x8x128xf32, #tpu.memory_space<vmem>>, vector<1x1x1x8x128xf32>,
      %c0_51 = arith.constant 0 : index
      %c0_52 = arith.constant 0 : index
      %c3 = arith.constant 3 : index
      %c0_53 = arith.constant 0 : index
      %c0_54 = arith.constant 0 : index
      %102 = vector.load %arg5[%c0_51, %c0_52, %c3, %c0_53, %c0_54] : memref<1x1x6x8x128xf32, #tpu.memory_space<vmem>>, vector<1x1x1x8x128xf32>
      %103 = vector.shape_cast %102 : vector<1x1x1x8x128xf32> to vector<8x128xf32>
      %104 = vector.shape_cast %62 : vector<8x128xf32> to vector<1x1x1x8x128xf32>
      tpu.vector_store %arg5[%c0_51, %c0_52, %c3, %c0_53, %c0_54], %104 {strides = array<i32>} : memref<1x1x6x8x128xf32, #tpu.memory_space<vmem>>, vector<1x1x1x8x128xf32>,
      %c0_55 = arith.constant 0 : index
      %c0_56 = arith.constant 0 : index
      %c4 = arith.constant 4 : index
      %c0_57 = arith.constant 0 : index
      %c0_58 = arith.constant 0 : index
      %105 = vector.load %arg5[%c0_55, %c0_56, %c4, %c0_57, %c0_58] : memref<1x1x6x8x128xf32, #tpu.memory_space<vmem>>, vector<1x1x1x8x128xf32>
      %106 = vector.shape_cast %105 : vector<1x1x1x8x128xf32> to vector<8x128xf32>
      %107 = vector.shape_cast %74 : vector<8x128xf32> to vector<1x1x1x8x128xf32>
      tpu.vector_store %arg5[%c0_55, %c0_56, %c4, %c0_57, %c0_58], %107 {strides = array<i32>} : memref<1x1x6x8x128xf32, #tpu.memory_space<vmem>>, vector<1x1x1x8x128xf32>,
      %c0_59 = arith.constant 0 : index
      %c0_60 = arith.constant 0 : index
      %c5 = arith.constant 5 : index
      %c0_61 = arith.constant 0 : index
      %c0_62 = arith.constant 0 : index
      %108 = vector.load %arg5[%c0_59, %c0_60, %c5, %c0_61, %c0_62] : memref<1x1x6x8x128xf32, #tpu.memory_space<vmem>>, vector<1x1x1x8x128xf32>
      %109 = vector.shape_cast %108 : vector<1x1x1x8x128xf32> to vector<8x128xf32>
      %110 = vector.shape_cast %86 : vector<8x128xf32> to vector<1x1x1x8x128xf32>
      tpu.vector_store %arg5[%c0_59, %c0_60, %c5, %c0_61, %c0_62], %110 {strides = array<i32>} : memref<1x1x6x8x128xf32, #tpu.memory_space<vmem>>, vector<1x1x1x8x128xf32>,
    } else {
    }
    %c0_i32_36 = arith.constant 0 : i32
    %90 = arith.cmpi sgt, %arg2, %c0_i32_36 : i32
    %91 = arith.extui %90 : i1 to i32
    %c0_i32_37 = arith.constant 0 : i32
    %92 = arith.cmpi ne, %91, %c0_i32_37 : i32
    scf.if %92 {
      %c0_38 = arith.constant 0 : index
      %c0_39 = arith.constant 0 : index
      %c0_40 = arith.constant 0 : index
      %c0_41 = arith.constant 0 : index
      %c0_42 = arith.constant 0 : index
      %93 = vector.load %arg5[%c0_38, %c0_39, %c0_40, %c0_41, %c0_42] : memref<1x1x6x8x128xf32, #tpu.memory_space<vmem>>, vector<1x1x1x8x128xf32>
      %94 = vector.shape_cast %93 : vector<1x1x1x8x128xf32> to vector<8x128xf32>
      %95 = arith.addf %94, %26 : vector<8x128xf32>
      %c0_43 = arith.constant 0 : index
      %c0_44 = arith.constant 0 : index
      %c0_45 = arith.constant 0 : index
      %c0_46 = arith.constant 0 : index
      %c0_47 = arith.constant 0 : index
      %96 = vector.load %arg5[%c0_43, %c0_44, %c0_45, %c0_46, %c0_47] : memref<1x1x6x8x128xf32, #tpu.memory_space<vmem>>, vector<1x1x1x8x128xf32>
      %97 = vector.shape_cast %96 : vector<1x1x1x8x128xf32> to vector<8x128xf32>
      %98 = vector.shape_cast %95 : vector<8x128xf32> to vector<1x1x1x8x128xf32>
      tpu.vector_store %arg5[%c0_43, %c0_44, %c0_45, %c0_46, %c0_47], %98 {strides = array<i32>} : memref<1x1x6x8x128xf32, #tpu.memory_space<vmem>>, vector<1x1x1x8x128xf32>,
      %c0_48 = arith.constant 0 : index
      %c0_49 = arith.constant 0 : index
      %c1 = arith.constant 1 : index
      %c0_50 = arith.constant 0 : index
      %c0_51 = arith.constant 0 : index
      %99 = vector.load %arg5[%c0_48, %c0_49, %c1, %c0_50, %c0_51] : memref<1x1x6x8x128xf32, #tpu.memory_space<vmem>>, vector<1x1x1x8x128xf32>
      %100 = vector.shape_cast %99 : vector<1x1x1x8x128xf32> to vector<8x128xf32>
      %101 = arith.addf %100, %38 : vector<8x128xf32>
      %c0_52 = arith.constant 0 : index
      %c0_53 = arith.constant 0 : index
      %c1_54 = arith.constant 1 : index
      %c0_55 = arith.constant 0 : index
      %c0_56 = arith.constant 0 : index
      %102 = vector.load %arg5[%c0_52, %c0_53, %c1_54, %c0_55, %c0_56] : memref<1x1x6x8x128xf32, #tpu.memory_space<vmem>>, vector<1x1x1x8x128xf32>
      %103 = vector.shape_cast %102 : vector<1x1x1x8x128xf32> to vector<8x128xf32>
      %104 = vector.shape_cast %101 : vector<8x128xf32> to vector<1x1x1x8x128xf32>
      tpu.vector_store %arg5[%c0_52, %c0_53, %c1_54, %c0_55, %c0_56], %104 {strides = array<i32>} : memref<1x1x6x8x128xf32, #tpu.memory_space<vmem>>, vector<1x1x1x8x128xf32>,
      %c0_57 = arith.constant 0 : index
      %c0_58 = arith.constant 0 : index
      %c2 = arith.constant 2 : index
      %c0_59 = arith.constant 0 : index
      %c0_60 = arith.constant 0 : index
      %105 = vector.load %arg5[%c0_57, %c0_58, %c2, %c0_59, %c0_60] : memref<1x1x6x8x128xf32, #tpu.memory_space<vmem>>, vector<1x1x1x8x128xf32>
      %106 = vector.shape_cast %105 : vector<1x1x1x8x128xf32> to vector<8x128xf32>
      %107 = arith.addf %106, %50 : vector<8x128xf32>
      %c0_61 = arith.constant 0 : index
      %c0_62 = arith.constant 0 : index
      %c2_63 = arith.constant 2 : index
      %c0_64 = arith.constant 0 : index
      %c0_65 = arith.constant 0 : index
      %108 = vector.load %arg5[%c0_61, %c0_62, %c2_63, %c0_64, %c0_65] : memref<1x1x6x8x128xf32, #tpu.memory_space<vmem>>, vector<1x1x1x8x128xf32>
      %109 = vector.shape_cast %108 : vector<1x1x1x8x128xf32> to vector<8x128xf32>
      %110 = vector.shape_cast %107 : vector<8x128xf32> to vector<1x1x1x8x128xf32>
      tpu.vector_store %arg5[%c0_61, %c0_62, %c2_63, %c0_64, %c0_65], %110 {strides = array<i32>} : memref<1x1x6x8x128xf32, #tpu.memory_space<vmem>>, vector<1x1x1x8x128xf32>,
      %c0_66 = arith.constant 0 : index
      %c0_67 = arith.constant 0 : index
      %c3 = arith.constant 3 : index
      %c0_68 = arith.constant 0 : index
      %c0_69 = arith.constant 0 : index
      %111 = vector.load %arg5[%c0_66, %c0_67, %c3, %c0_68, %c0_69] : memref<1x1x6x8x128xf32, #tpu.memory_space<vmem>>, vector<1x1x1x8x128xf32>
      %112 = vector.shape_cast %111 : vector<1x1x1x8x128xf32> to vector<8x128xf32>
      %113 = arith.addf %112, %62 : vector<8x128xf32>
      %c0_70 = arith.constant 0 : index
      %c0_71 = arith.constant 0 : index
      %c3_72 = arith.constant 3 : index
      %c0_73 = arith.constant 0 : index
      %c0_74 = arith.constant 0 : index
      %114 = vector.load %arg5[%c0_70, %c0_71, %c3_72, %c0_73, %c0_74] : memref<1x1x6x8x128xf32, #tpu.memory_space<vmem>>, vector<1x1x1x8x128xf32>
      %115 = vector.shape_cast %114 : vector<1x1x1x8x128xf32> to vector<8x128xf32>
      %116 = vector.shape_cast %113 : vector<8x128xf32> to vector<1x1x1x8x128xf32>
      tpu.vector_store %arg5[%c0_70, %c0_71, %c3_72, %c0_73, %c0_74], %116 {strides = array<i32>} : memref<1x1x6x8x128xf32, #tpu.memory_space<vmem>>, vector<1x1x1x8x128xf32>,
      %c0_75 = arith.constant 0 : index
      %c0_76 = arith.constant 0 : index
      %c4 = arith.constant 4 : index
      %c0_77 = arith.constant 0 : index
      %c0_78 = arith.constant 0 : index
      %117 = vector.load %arg5[%c0_75, %c0_76, %c4, %c0_77, %c0_78] : memref<1x1x6x8x128xf32, #tpu.memory_space<vmem>>, vector<1x1x1x8x128xf32>
      %118 = vector.shape_cast %117 : vector<1x1x1x8x128xf32> to vector<8x128xf32>
      %119 = arith.addf %118, %74 : vector<8x128xf32>
      %c0_79 = arith.constant 0 : index
      %c0_80 = arith.constant 0 : index
      %c4_81 = arith.constant 4 : index
      %c0_82 = arith.constant 0 : index
      %c0_83 = arith.constant 0 : index
      %120 = vector.load %arg5[%c0_79, %c0_80, %c4_81, %c0_82, %c0_83] : memref<1x1x6x8x128xf32, #tpu.memory_space<vmem>>, vector<1x1x1x8x128xf32>
      %121 = vector.shape_cast %120 : vector<1x1x1x8x128xf32> to vector<8x128xf32>
      %122 = vector.shape_cast %119 : vector<8x128xf32> to vector<1x1x1x8x128xf32>
      tpu.vector_store %arg5[%c0_79, %c0_80, %c4_81, %c0_82, %c0_83], %122 {strides = array<i32>} : memref<1x1x6x8x128xf32, #tpu.memory_space<vmem>>, vector<1x1x1x8x128xf32>,
      %c0_84 = arith.constant 0 : index
      %c0_85 = arith.constant 0 : index
      %c5 = arith.constant 5 : index
      %c0_86 = arith.constant 0 : index
      %c0_87 = arith.constant 0 : index
      %123 = vector.load %arg5[%c0_84, %c0_85, %c5, %c0_86, %c0_87] : memref<1x1x6x8x128xf32, #tpu.memory_space<vmem>>, vector<1x1x1x8x128xf32>
      %124 = vector.shape_cast %123 : vector<1x1x1x8x128xf32> to vector<8x128xf32>
      %125 = arith.addf %124, %86 : vector<8x128xf32>
      %c0_88 = arith.constant 0 : index
      %c0_89 = arith.constant 0 : index
      %c5_90 = arith.constant 5 : index
      %c0_91 = arith.constant 0 : index
      %c0_92 = arith.constant 0 : index
      %126 = vector.load %arg5[%c0_88, %c0_89, %c5_90, %c0_91, %c0_92] : memref<1x1x6x8x128xf32, #tpu.memory_space<vmem>>, vector<1x1x1x8x128xf32>
      %127 = vector.shape_cast %126 : vector<1x1x1x8x128xf32> to vector<8x128xf32>
      %128 = vector.shape_cast %125 : vector<8x128xf32> to vector<1x1x1x8x128xf32>
      tpu.vector_store %arg5[%c0_88, %c0_89, %c5_90, %c0_91, %c0_92], %128 {strides = array<i32>} : memref<1x1x6x8x128xf32, #tpu.memory_space<vmem>>, vector<1x1x1x8x128xf32>,
    } else {
    }
    return
  }
  func.func @transform_0(%arg0: i32, %arg1: i32, %arg2: i32) -> (i32, i32, i32) {
    %c1_i32 = arith.constant 1 : i32
    %0 = arith.muli %arg1, %c1_i32 : i32
    %1 = arith.addi %0, %arg2 : i32
    %c0_i32 = arith.constant 0 : i32
    %c0_i32_0 = arith.constant 0 : i32
    return %arg0, %1, %c0_i32 : i32, i32, i32
  }
  func.func @transform_1(%arg0: i32, %arg1: i32, %arg2: i32) -> (i32, i32, i32) {
    %c1_i32 = arith.constant 1 : i32
    %0 = arith.muli %arg1, %c1_i32 : i32
    %1 = arith.addi %0, %arg2 : i32
    %c0_i32 = arith.constant 0 : i32
    %c0_i32_0 = arith.constant 0 : i32
    return %arg0, %1, %c0_i32 : i32, i32, i32
  }
  func.func @transform_2(%arg0: i32, %arg1: i32, %arg2: i32) -> (i32, i32, i32, i32, i32) {
    %c0_i32 = arith.constant 0 : i32
    %c0_i32_0 = arith.constant 0 : i32
    %c0_i32_1 = arith.constant 0 : i32
    %c0_i32_2 = arith.constant 0 : i32
    return %arg0, %arg1, %c0_i32, %c0_i32_0, %c0_i32_1 : i32, i32, i32, i32, i32
  }
}

</mosaic_0001>

<llo_original>
// kernel: deltas_paint.1
$region0: #{deltas_paint.1}
  #allocation0 [shape = 'u32[]', space=smem, size = 0x4, offset = 0x4, fixed_abs, tag = 'smem constant byte address 0x4 - core index']
  #allocation1 [shape = 'u32[144,128]{1,0:T(1,128)}', space=vmem, size = 0x12000, scoped, tag = 'internal scratch']
  %s0 = inlined_call_operand.vmem [shape: f32[2,8,128], index: 0, kind: input, shape index: {}]
  %s1 = inlined_call_operand.vmem [shape: f32[2,8,128], index: 1, kind: input, shape index: {}]
  %s2 = inlined_call_operand.vmem [shape: f32[2,1,6,8,128], index: 2, kind: output, shape index: {}]
  %s3 = sld [smem:[#allocation0]]
  $region49: #{deltas_paint.1} parent=0
    _
  %s5 = ssub.s32 1, %s3
  %s6 = scalar_select 0, %s5, %s3
  loop: start=0, step=1, limit=4
  $region2: #{deltas_paint.1} parent=0 // loop_pre_header
    _
  $region3: #{deltas_paint.1} parent=0 // loop_header
    %s8 = sphi 0, %s12
    %p9 = scmp.ge.s32.totalorder %s8, 4
    %s15 = sphi 0, %s34
    %s16 = sphi 0, %s30
    %s17 = sphi 0, %s26
    %s18 = sphi 0, %s15
    %s19 = sphi 0, %s16
    %s20 = sphi 0, %s17
    %s21 = sphi 0, %s18
    %s22 = sphi 0, %s19
    %s23 = sphi 0, %s20
    %s41 = sphi 0, %s43
    %s44 = sphi 0, %s41
    %s45 = sphi 0, %s44
    %s61 = sphi 0, %s45
    %s71 = sphi 0, %s73
    %s74 = sphi 0, %s71
    %s75 = sphi 0, %s74
    %s91 = sphi 0, %s75
    %s99 = sphi 0, %s101
    %s102 = sphi 0, %s99
    %s103 = sphi 0, %s102
    %s119 = sphi 0, %s103
  $region4: #{deltas_paint.1} parent=0 // loop_header_branch
    %11 = sbr.rel (%p9) target = $region8
  $region5: #{deltas_paint.1} parent=0 // loop_body
    %s13 = ssub.s32 %s8, 1
    %s14 = ssub.s32 %s8, 2
    %s24 = sadd.s32 1, %s17
    %p25 = scmp.ge.s32.totalorder %s24, 1
    %s26 = scalar_select %p25, 0, %s24
    %s27 = sadd.s32 1, %s16
    %s28 = scalar_select %p25, %s27, %s16
    %p29 = scmp.ge.s32.totalorder %s28, 1
    %s30 = scalar_select %p29, 0, %s28
    %s31 = sadd.s32 1, %s15
    %s32 = scalar_select %p29, %s31, %s15
    %p33 = scmp.ge.s32.totalorder %s32, 2
    %s34 = scalar_select %p33, 0, %s32
    %s35 = sadd.s32 %s16, %s17
    %s36 = sadd.s32 %s30, %s26
    %s37 = ssub.s32 %s15, %s34
    %s38 = ssub.s32 %s35, %s36
    %s39 = sor.u32 %s37, %s38
    %p40 = scmp.eq.s32.totalorder %s39, 0
    %s42 = sadd.s32 %s41, 1
    %s43 = scalar_select %p40, %s41, %s42
    %p46 = pneg %p40
    %p47 = scmp.eq.s32.totalorder %s8, 1
    %p48 = por %p46, %p47
    %p49 = scmp.ne.s32.totalorder %s41, %s44
    %p50 = scmp.eq.s32.totalorder %s8, 0
    %p51 = por %p49, %p50
    %p52 = scmp.ne.s32.totalorder %s41, %s44
    %p53 = scmp.eq.s32.totalorder %s13, 1
    %p54 = por %p52, %p53
    %p55 = scmp.ne.s32.totalorder %s44, %s45
    %p56 = scmp.eq.s32.totalorder %s13, 0
    %p57 = por %p55, %p56
    %p58 = scmp.ne.s32.totalorder %s44, %s45
    %p59 = scmp.eq.s32.totalorder %s14, 1
    %p60 = por %p58, %p59
    %p62 = scmp.ne.s32.totalorder %s45, %s61
    %p63 = scmp.eq.s32.totalorder %s14, 0
    %p64 = por %p62, %p63
    %s65 = sadd.s32 %s16, %s17
    %s66 = sadd.s32 %s30, %s26
    %s67 = ssub.s32 %s15, %s34
    %s68 = ssub.s32 %s65, %s66
    %s69 = sor.u32 %s67, %s68
    %p70 = scmp.eq.s32.totalorder %s69, 0
    %s72 = sadd.s32 %s71, 1
    %s73 = scalar_select %p70, %s71, %s72
    %p76 = pneg %p70
    %p77 = scmp.eq.s32.totalorder %s8, 1
    %p78 = por %p76, %p77
    %p79 = scmp.ne.s32.totalorder %s71, %s74
    %p80 = scmp.eq.s32.totalorder %s8, 0
    %p81 = por %p79, %p80
    %p82 = scmp.ne.s32.totalorder %s71, %s74
    %p83 = scmp.eq.s32.totalorder %s13, 1
    %p84 = por %p82, %p83
    %p85 = scmp.ne.s32.totalorder %s74, %s75
    %p86 = scmp.eq.s32.totalorder %s13, 0
    %p87 = por %p85, %p86
    %p88 = scmp.ne.s32.totalorder %s74, %s75
    %p89 = scmp.eq.s32.totalorder %s14, 1
    %p90 = por %p88, %p89
    %p92 = scmp.ne.s32.totalorder %s75, %s91
    %p93 = scmp.eq.s32.totalorder %s14, 0
    %p94 = por %p92, %p93
    %s95 = ssub.s32 %s15, %s34
    %s96 = ssub.s32 %s16, %s30
    %s97 = sor.u32 %s95, %s96
    %p98 = scmp.eq.s32.totalorder %s97, 0
    %s100 = sadd.s32 %s99, 1
    %s101 = scalar_select %p98, %s99, %s100
    %p104 = pneg %p98
    %p105 = scmp.eq.s32.totalorder %s8, 1
    %p106 = por %p104, %p105
    %p107 = scmp.ne.s32.totalorder %s99, %s102
    %p108 = scmp.eq.s32.totalorder %s8, 0
    %p109 = por %p107, %p108
    %p110 = scmp.ne.s32.totalorder %s99, %s102
    %p111 = scmp.eq.s32.totalorder %s13, 1
    %p112 = por %p110, %p111
    %p113 = scmp.ne.s32.totalorder %s102, %s103
    %p114 = scmp.eq.s32.totalorder %s13, 0
    %p115 = por %p113, %p114
    %p116 = scmp.ne.s32.totalorder %s102, %s103
    %p117 = scmp.eq.s32.totalorder %s14, 1
    %p118 = por %p116, %p117
    %p120 = scmp.ne.s32.totalorder %s103, %s119
    %p121 = scmp.eq.s32.totalorder %s14, 0
    %p122 = por %p120, %p121
    %p123 = scmp.le.s32.totalorder 1, %s8
    %p124 = scmp.lt.s32.totalorder %s8, 3
    %p125 = pnand %p123, %p124
    %p126 = pneg %p125
    // Predicated region
    $region9: #{deltas_paint.1} parent=5 // pred_check
      _
    $region10: #{deltas_paint.1} parent=5 // pred_check_branch
      %128 = sbr.rel (%p125) target = $region12
    $region11: #{deltas_paint.1} parent=5 // pred_region
      %s129 = ssub.s32 %s8, 1
    $region12: #{deltas_paint.1} parent=5 // pred_fallthru
      _
    %p130 = scmp.lt.s32.totalorder %s8, 2
    // Predicated region
    $region13: #{deltas_paint.1} parent=5 // pred_check
      %p131 = pneg %p130
    $region14: #{deltas_paint.1} parent=5 // pred_check_branch
      %133 = sbr.rel (%p131) target = $region16
    $region15: #{deltas_paint.1} parent=5 // pred_region
      // Predicated region
      $region17: #{deltas_paint.1} parent=15 // pred_check
        %p134 = pneg %p51
      $region18: #{deltas_paint.1} parent=15 // pred_check_branch
        %136 = sbr.rel (%p134) target = $region20
      $region19: #{deltas_paint.1} parent=15 // pred_region
        %s137 = sadd.s32 %s16, %s17
        %p138 = scmp.lt.s32.totalorder %s15, 1
        %s139 = scalar_select %p138, %s15, 1
        %p140 = scmp.lt.s32.totalorder %s137, 0
        %s141 = scalar_select %p140, %s137, 0
        %s142 = sadd.s32 %s141, %s139
        %s143 = smul.addr %s142, 8
        %s144 = scalar_lea.vmem %s0, %s143
        %s145 = sadd.s32 %s16, %s17
      $region20: #{deltas_paint.1} parent=15 // pred_fallthru
        _
      // Predicated region
      $region21: #{deltas_paint.1} parent=15 // pred_check
        %p146 = pneg %p81
      $region22: #{deltas_paint.1} parent=15 // pred_check_branch
        %148 = sbr.rel (%p146) target = $region24
      $region23: #{deltas_paint.1} parent=15 // pred_region
        %s149 = sadd.s32 %s16, %s17
        %p150 = scmp.lt.s32.totalorder %s15, 1
        %s151 = scalar_select %p150, %s15, 1
        %p152 = scmp.lt.s32.totalorder %s149, 0
        %s153 = scalar_select %p152, %s149, 0
        %s154 = sadd.s32 %s153, %s151
        %s155 = smul.addr %s154, 8
        %s156 = scalar_lea.vmem %s1, %s155
        %s157 = sadd.s32 %s16, %s17
      $region24: #{deltas_paint.1} parent=15 // pred_fallthru
        _
    $region16: #{deltas_paint.1} parent=5 // pred_fallthru
      _
    %p158 = scmp.le.s32.totalorder 1, %s8
    %p159 = scmp.lt.s32.totalorder %s8, 3
    %p160 = pnand %p158, %p159
    %p161 = pneg %p160
    // Predicated region
    $region25: #{deltas_paint.1} parent=5 // pred_check
      _
    $region26: #{deltas_paint.1} parent=5 // pred_check_branch
      %163 = sbr.rel (%p160) target = $region28
    $region27: #{deltas_paint.1} parent=5 // pred_region
      %s164 = ssub.s32 %s8, 1
      %s165 = sadd.s32 %s19, %s20
      %p166 = scmp.lt.s32.totalorder %s18, 1
      %s167 = scalar_select %p166, %s18, 1
      %p168 = scmp.lt.s32.totalorder %s165, 0
      %s169 = scalar_select %p168, %s165, 0
      %s170 = sadd.s32 %s169, %s167
      %s171 = smul.addr %s170, 8
      %s172 = scalar_lea.vmem %s0, %s171
      %p173 = pneg %p57
      %p174 = pneg %p54
      %s175 = sadd.s32 %s19, %s20
      %p176 = scmp.lt.s32.totalorder %s18, 1
      %s177 = scalar_select %p176, %s18, 1
      %p178 = scmp.lt.s32.totalorder %s175, 0
      %s179 = scalar_select %p178, %s175, 0
      %s180 = sadd.s32 %s179, %s177
      %s181 = smul.addr %s180, 8
      %s182 = scalar_lea.vmem %s1, %s181
      %p183 = pneg %p87
      %p184 = pneg %p84
      %p185 = pneg %p115
      %p186 = pneg %p112
      %p187 = scmp.lt.s32.totalorder %s18, 1
      %s188 = scalar_select %p187, %s18, 1
      %p189 = scmp.lt.s32.totalorder %s19, 0
      %s190 = scalar_select %p189, %s19, 0
      %s191 = smul.addr %s190, 6
      %s192 = smul.addr %s188, 6
      %s193 = sadd.s32 %s191, %s192
      %s194 = smul.addr %s193, 8
      %s195 = scalar_lea.vmem %s2, %s194
      %s196 = sadd.s32 %s19, %s20
      %p197 = scmp.lt.s32.totalorder %s18, 1
      %s198 = scalar_select %p197, %s18, 1
      %p199 = scmp.lt.s32.totalorder %s196, 0
      %s200 = scalar_select %p199, %s196, 0
      %s201 = sadd.s32 %s200, %s198
      %s202 = smul.addr %s201, 8
      %s203 = scalar_lea.vmem %s0, %s202
      %s204 = sadd.s32 %s19, %s20
      %s205 = sadd.s32 %s19, %s20
      %p206 = scmp.lt.s32.totalorder %s18, 1
      %s207 = scalar_select %p206, %s18, 1
      %p208 = scmp.lt.s32.totalorder %s205, 0
      %s209 = scalar_select %p208, %s205, 0
      %s210 = sadd.s32 %s209, %s207
      %s211 = smul.addr %s210, 8
      %s212 = scalar_lea.vmem %s1, %s211
      %s213 = sadd.s32 %s19, %s20
      %p214 = scmp.lt.s32.totalorder %s18, 1
      %s215 = scalar_select %p214, %s18, 1
      %p216 = scmp.lt.s32.totalorder %s19, 0
      %s217 = scalar_select %p216, %s19, 0
      %s218 = smul.addr %s217, 6
      %s219 = smul.addr %s215, 6
      %s220 = sadd.s32 %s218, %s219
      %s221 = smul.addr %s220, 8
      %s222 = scalar_lea.vmem %s2, %s221
      %v223 = vld [vmem:[%s203] sm:$0xff]
      %v224 = vld [vmem:[%s212] sm:$0xff]
      %vm225 = vcmp.gt.f32.partialorder %v224, 0.0
      %v226 = vsel %vm225, 1.0, 0.0
      %v227 = vmul.f32 %v223, %v226
      %v228 = vmul.f32 %v224, %v226
      %v229 = vadd.f32 %v227, 0.001
      %vm230 = vcmp.le.f32.partialorder %v229, 0.0
      %v231 = vadd.f32 %v226, 0.0
      %v232 = vmul.f32 %v229, 1.05
      %vm233 = vcmp.lt.f32.partialorder %v228, %v232
      %vm234 = vmor %vm230, %vm233
      %v235 = vmul.f32 %v228, 1.05
      %vm236 = vcmp.lt.f32.partialorder %v227, %v235
      %vm237 = vmand %vm234, %vm236
      %v238 = vsel %vm237, 1.0, 0.0
      %v239 = vadd.f32 %v238, 0.0
      %v240 = vmul.f32 %v229, 1.1
      %vm241 = vcmp.lt.f32.partialorder %v228, %v240
      %vm242 = vmor %vm230, %vm241
      %v243 = vmul.f32 %v228, 1.1
      %vm244 = vcmp.lt.f32.partialorder %v227, %v243
      %vm245 = vmand %vm242, %vm244
      %v246 = vsel %vm245, 1.0, 0.0
      %v247 = vadd.f32 %v246, 0.0
      %v248 = vmul.f32 %v229, 1.25
      %vm249 = vcmp.lt.f32.partialorder %v228, %v248
      %vm250 = vmor %vm230, %vm249
      %v251 = vmul.f32 %v228, 1.25
      %vm252 = vcmp.lt.f32.partialorder %v227, %v251
      %vm253 = vmand %vm250, %vm252
      %v254 = vsel %vm253, 1.0, 0.0
      %v255 = vadd.f32 %v254, 0.0
      %v256 = vmul.f32 %v229, 1.5625
      %vm257 = vcmp.lt.f32.partialorder %v228, %v256
      %vm258 = vmor %vm230, %vm257
      %v259 = vmul.f32 %v228, 1.5625
      %vm260 = vcmp.lt.f32.partialorder %v227, %v259
      %vm261 = vmand %vm258, %vm260
      %v262 = vsel %vm261, 1.0, 0.0
      %v263 = vadd.f32 %v262, 0.0
      %v264 = vmul.f32 %v229, 1.953125
      %vm265 = vcmp.lt.f32.partialorder %v228, %v264
      %vm266 = vmor %vm230, %vm265
      %v267 = vmul.f32 %v228, 1.953125
      %vm268 = vcmp.lt.f32.partialorder %v227, %v267
      %vm269 = vmand %vm266, %vm268
      %v270 = vsel %vm269, 1.0, 0.0
      %v271 = vadd.f32 %v270, 0.0
      %p272 = scmp.eq.s32.totalorder %s20, 0
      // Predicated region
      $region29: #{deltas_paint.1} parent=27 // pred_check
        %p273 = pneg %p272
      $region30: #{deltas_paint.1} parent=27 // pred_check_branch
        %275 = sbr.rel (%p273) target = $region32
      $region31: #{deltas_paint.1} parent=27 // pred_region
        %276 = vst [vmem:[%s222] sm:$0xff] %v231
        %s277 = scalar_lea.vmem %s222, 8
        %278 = vst [vmem:[%s277] sm:$0xff] %v239
        %s279 = scalar_lea.vmem %s222, 16
        %280 = vst [vmem:[%s279] sm:$0xff] %v247
        %s281 = scalar_lea.vmem %s222, 24
        %282 = vst [vmem:[%s281] sm:$0xff] %v255
        %s283 = scalar_lea.vmem %s222, 32
        %284 = vst [vmem:[%s283] sm:$0xff] %v263
        %s285 = scalar_lea.vmem %s222, 40
        %286 = vst [vmem:[%s285] sm:$0xff] %v271
      $region32: #{deltas_paint.1} parent=27 // pred_fallthru
        _
      %p287 = scmp.gt.s32.totalorder %s20, 0
      // Predicated region
      $region33: #{deltas_paint.1} parent=27 // pred_check
        %p288 = pneg %p287
      $region34: #{deltas_paint.1} parent=27 // pred_check_branch
        %290 = sbr.rel (%p288) target = $region36
      $region35: #{deltas_paint.1} parent=27 // pred_region
        %v291 = vld [vmem:[%s222] sm:$0xff]
        %v292 = vadd.f32 %v291, %v231
        %293 = vst [vmem:[%s222] sm:$0xff] %v292
        %s294 = scalar_lea.vmem %s222, 8
        %v295 = vld [vmem:[%s294] sm:$0xff]
        %v296 = vadd.f32 %v295, %v239
        %297 = vst [vmem:[%s294] sm:$0xff] %v296
        %s298 = scalar_lea.vmem %s222, 16
        %v299 = vld [vmem:[%s298] sm:$0xff]
        %v300 = vadd.f32 %v299, %v247
        %301 = vst [vmem:[%s298] sm:$0xff] %v300
        %s302 = scalar_lea.vmem %s222, 24
        %v303 = vld [vmem:[%s302] sm:$0xff]
        %v304 = vadd.f32 %v303, %v255
        %305 = vst [vmem:[%s302] sm:$0xff] %v304
        %s306 = scalar_lea.vmem %s222, 32
        %v307 = vld [vmem:[%s306] sm:$0xff]
        %v308 = vadd.f32 %v307, %v263
        %309 = vst [vmem:[%s306] sm:$0xff] %v308
        %s310 = scalar_lea.vmem %s222, 40
        %v311 = vld [vmem:[%s310] sm:$0xff]
        %v312 = vadd.f32 %v311, %v271
        %313 = vst [vmem:[%s310] sm:$0xff] %v312
      $region36: #{deltas_paint.1} parent=27 // pred_fallthru
        _
      %p314 = scmp.lt.s32.totalorder %s18, 1
      %s315 = scalar_select %p314, %s18, 1
      %p316 = scmp.lt.s32.totalorder %s19, 0
      %s317 = scalar_select %p316, %s19, 0
      %s318 = smul.addr %s317, 6
      %s319 = smul.addr %s315, 6
      %s320 = sadd.s32 %s318, %s319
      %s321 = smul.addr %s320, 8
      %s322 = scalar_lea.vmem %s2, %s321
      // Predicated region
      $region37: #{deltas_paint.1} parent=27 // pred_check
        %p323 = pneg %p112
      $region38: #{deltas_paint.1} parent=27 // pred_check_branch
        %325 = sbr.rel (%p323) target = $region40
      $region39: #{deltas_paint.1} parent=27 // pred_region
        _
      $region40: #{deltas_paint.1} parent=27 // pred_fallthru
        _
    $region28: #{deltas_paint.1} parent=5 // pred_fallthru
      _
    %p326 = scmp.le.s32.totalorder 2, %s8
    // Predicated region
    $region41: #{deltas_paint.1} parent=5 // pred_check
      %p327 = pneg %p326
    $region42: #{deltas_paint.1} parent=5 // pred_check_branch
      %329 = sbr.rel (%p327) target = $region44
    $region43: #{deltas_paint.1} parent=5 // pred_region
      %s330 = ssub.s32 %s8, 2
      // Predicated region
      $region45: #{deltas_paint.1} parent=43 // pred_check
        %p331 = pneg %p118
      $region46: #{deltas_paint.1} parent=43 // pred_check_branch
        %333 = sbr.rel (%p331) target = $region48
      $region47: #{deltas_paint.1} parent=43 // pred_region
        %p334 = scmp.lt.s32.totalorder %s21, 1
        %s335 = scalar_select %p334, %s21, 1
        %p336 = scmp.lt.s32.totalorder %s22, 0
        %s337 = scalar_select %p336, %s22, 0
        %s338 = smul.addr %s337, 6
        %s339 = smul.addr %s335, 6
        %s340 = sadd.s32 %s338, %s339
        %s341 = smul.addr %s340, 8
        %s342 = scalar_lea.vmem %s2, %s341
      $region48: #{deltas_paint.1} parent=43 // pred_fallthru
        _
    $region44: #{deltas_paint.1} parent=5 // pred_fallthru
      _
  $region6: #{deltas_paint.1} parent=0 // loop_footer
    %s12 = sadd.s32 1, %s8
  $region7: #{deltas_paint.1} parent=0 // loop_footer_branch
    %7 = sbr.rel target = $region3
  $region8: #{deltas_paint.1} parent=0 // loop_exit
    _

</llo_original>
